<compile_context>
chip_gen: v6e
topology: v6e:2x2x1
jax: 0.10.0
libtpu: 0.0.40
codegen_flags: <defaults>
</compile_context>

<pallas_src>
import functools

import jax
import jax.numpy as jnp
import numpy as np
from jax import lax
from jax.experimental import pallas as pl
from jax.experimental.pallas import tpu as pltpu

_SUB = 8        # f32 sublanes per vreg
_LANE = 128     # lanes per vreg
_UNROLL_T = 32  # static-unroll threshold for the sequence loop
_VMEM_INPUT_BUDGET = 16 * 1024 * 1024  # double-buffered X-block budget (fits all chips)


# ----------------------------------------------------------------------------
# Pallas kernel: full MinArchitecture recurrence with the folded NSR cell.
# ----------------------------------------------------------------------------
def _min_arch_kernel(xt_ref, par_ref, out_ref, *, seq_len):
    # Folded parameters (computed once in the wrapper):
    #   d0, d1 : zeta * (softmax(W1) - softmax(W2))   (selector difference)
    #   c0     : bias + Wzero
    #   c1     : Wsign
    #   c2     : -2 * Wzero
    d0 = par_ref[0]
    d1 = par_ref[1]
    c0 = par_ref[2]
    c1 = par_ref[3]
    c2 = par_ref[4]

    def step(h, xi):
        # x = current @ (softmax(W1) - softmax(W2)); zeta folded into d0/d1
        x = h * d0 + xi * d1
        t = jnp.tanh(x)                                    # EUP
        state = jax.nn.sigmoid(c0 + t * (c1 + c2 * t))     # EUP + 2 FMA
        # h_next = <current, [s, 1-s]> = h*s + xi*(1-s) = xi + s*(h - xi)
        return xi + state * (h - xi)

    h = xt_ref[0]                                          # (8, Lb), vreg-dense
    if seq_len <= _UNROLL_T:
        for i in range(1, seq_len):
            h = step(h, xt_ref[i])
    else:
        h = lax.fori_loop(1, seq_len,
                          lambda i, hh: step(hh, xt_ref[i]), h, unroll=4)
    out_ref[...] = h


def _round_up(x, m):
    return ((x + m - 1) // m) * m


# ----------------------------------------------------------------------------
# Wrapper
# ----------------------------------------------------------------------------
def min_architecture_nsr(X, w1, w2, wsign, wzero, bias, *, zeta=1.0):
    B, T = X.shape
    S = w1.shape[0]
    assert S == 2, "MinArchitecture feeds the NSR (B, 2) vectors -> storage_size must be 2"

    # ---- fold every parameter down to 5 scalars (one SMEM vector) ----------
    s1 = jax.nn.softmax(w1.astype(jnp.float32), axis=0)    # (2, 1)
    s2 = jax.nn.softmax(w2.astype(jnp.float32), axis=0)    # (2, 1)
    params = jnp.concatenate([
        (zeta * (s1 - s2)).reshape(-1),                    # d0, d1 (zeta folded in)
        (bias + wzero).reshape(-1),                        # c0
        wsign.reshape(-1),                                 # c1
        (-2.0 * wzero).reshape(-1),                        # c2
    ]).astype(jnp.float32)                                 # (5,)

    # ---- vreg-dense batch layout: (B, T) -> (T, 8, B_pad/8) ----------------
    # Per-step operand xt[i] is a fully packed (8 sublane x Lb lane) slab.
    B_pad = _round_up(max(B, 1), _SUB * _LANE)
    L_total = B_pad // _SUB
    Xp = jnp.pad(X.astype(jnp.float32), ((0, B_pad - B), (0, 0)))
    # TODO(synk): this transpose is one extra HBM pass; emit X as (T, 8, B/8)
    # upstream (or do an in-kernel XLU transpose of a (block_b, T) tile) to
    # remove it once the producer layout can be changed.
    xt = Xp.reshape(_SUB, L_total, T).transpose(2, 0, 1)   # (T, 8, L_total)

    # ---- batch (lane) tiling sized from VMEM --------------------------------
    lb_cap = max(_LANE,
                 (_VMEM_INPUT_BUDGET // (2 * _SUB * T * 4)) // _LANE * _LANE)
    lb = min(L_total, lb_cap)
    # Keep >=2 blocks when the batch is large so the "parallel" grid axis can
    # shard across both v7x TensorCores (on 1-TC chips the extra grid step
    # costs ~0.35us, negligible at that size).
    if L_total >= 2 * _LANE:
        lb = min(lb, _round_up(pl.cdiv(L_total, 2), _LANE))
    grid = (pl.cdiv(L_total, lb),)
    # TODO(synk): for very long sequences add a T-chunk grid axis ("arbitrary",
    # h carried in VMEM scratch) so VMEM use stays independent of T.

    kernel = functools.partial(_min_arch_kernel, seq_len=T)
    out = pl.pallas_call(
        kernel,
        out_shape=jax.ShapeDtypeStruct((_SUB, L_total), jnp.float32),
        grid=grid,
        in_specs=[
            pl.BlockSpec((T, _SUB, lb), lambda i: (0, 0, i)),        # X slab
            pl.BlockSpec(memory_space=pltpu.MemorySpace.SMEM),       # 5 scalars
        ],
        out_specs=pl.BlockSpec((_SUB, lb), lambda i: (0, i)),
        compiler_params=pltpu.CompilerParams(
            dimension_semantics=("parallel",),
            vmem_limit_bytes=32 * 1024 * 1024),
    )(xt, params)

    # (8, L_total) lane-dense slab -> original batch order -> (B, 1)
    return out.reshape(B_pad)[:B].reshape(B, 1)


# ----------------------------------------------------------------------------
# Pure-JAX reference (mirrors the PyTorch MinArchitecture forward exactly).
# ----------------------------------------------------------------------------
def _nsr_reference(storage, w1, w2, wsign, wzero, bias, zeta):
    o1sel = jax.nn.softmax(w1, axis=0)
    o2sel = jax.nn.softmax(w2, axis=0)
    o1, o2 = storage @ o1sel, storage @ o2sel
    x = o1 - o2
    sign = jnp.tanh(zeta * x)
    zero = -1.0 + 2.0 * (1.0 - jnp.tanh(zeta * x) ** 2)
    sign, zero = sign @ wsign, zero @ wzero
    state = jax.nn.sigmoid(bias + sign + zero)
    return jnp.concatenate([state, 1.0 - state], axis=1)


def min_architecture_reference(X, w1, w2, wsign, wzero, bias, zeta=1.0):
    h = X[:, 0:1]
    for i in range(1, X.shape[1]):
        current = jnp.concatenate([h, X[:, i:i + 1]], axis=1)
        state = _nsr_reference(current, w1, w2, wsign, wzero, bias, zeta)
        h = jnp.sum(current * state, axis=1, keepdims=True)
    return h


def xavier_normal(key, shape):
    # torch.nn.init.xavier_normal_ for a 2-D tensor (fan_out, fan_in) = shape
    fan_out, fan_in = shape
    std = np.sqrt(2.0 / (fan_in + fan_out))
    return std * jax.random.normal(key, shape, dtype=jnp.float32)


if __name__ == "__main__":
    # MinArchitecture(model='nsr', storage=2, redundancy=1): the recurrence
    # feeds the NSR (B, 2) "current" vectors; zeta is hardcoded to 1.0.
    storage_size = 2
    zeta = 1.0
    batch = 8
    seq = 8

    key = jax.random.PRNGKey(0)
    k_x, k_w1, k_w2, k_ws, k_wz, k_b = jax.random.split(key, 6)

    X = jax.random.normal(k_x, (batch, seq), dtype=jnp.float32)
    Woperand1 = xavier_normal(k_w1, (storage_size, 1))
    Woperand2 = xavier_normal(k_w2, (storage_size, 1))
    Wsign = xavier_normal(k_ws, (1, 1))
    Wzero = xavier_normal(k_wz, (1, 1))
    bias = 0.1 * jax.random.normal(k_b, (1, 1), dtype=jnp.float32)

    out = min_architecture_nsr(X, Woperand1, Woperand2, Wsign, Wzero, bias,
                               zeta=zeta)
    out = jax.block_until_ready(out)

    ref = min_architecture_reference(X, Woperand1, Woperand2, Wsign, Wzero,
                                     bias, zeta=zeta)
    np.testing.assert_allclose(np.asarray(out), np.asarray(ref),
                               rtol=1e-4, atol=1e-5)
    assert out.shape == (batch, 1)

    print("KERNEL_OK")
</pallas_src>

<mosaic_0001>
module attributes {stable_mosaic.version = 11 : i64} {
  func.func @_min_arch_kernel(%arg0: i32, %arg1: memref<8x8x128xf32, #tpu.memory_space<vmem>>, %arg2: memref<5xf32, #tpu.memory_space<smem>>, %arg3: memref<8x128xf32, #tpu.memory_space<vmem>>) attributes {dimension_semantics = [#tpu.dimension_semantics<parallel>], iteration_bounds = array<i64: 1>, scalar_prefetch = 0 : i64, scratch_operands = 0 : i64, tpu.core_type = #tpu.core_type<tc>, window_params = [{transform_indices = @transform_0, window_bounds = array<i64: 8, 8, 128>}, {transform_indices = @transform_1, window_bounds = array<i64: 5>}, {transform_indices = @transform_2, window_bounds = array<i64: 8, 128>}]} {
    %c0 = arith.constant 0 : index
    %0 = memref.load %arg2[%c0] : memref<5xf32, #tpu.memory_space<smem>>
    %c1 = arith.constant 1 : index
    %1 = memref.load %arg2[%c1] : memref<5xf32, #tpu.memory_space<smem>>
    %c2 = arith.constant 2 : index
    %2 = memref.load %arg2[%c2] : memref<5xf32, #tpu.memory_space<smem>>
    %c3 = arith.constant 3 : index
    %3 = memref.load %arg2[%c3] : memref<5xf32, #tpu.memory_space<smem>>
    %c4 = arith.constant 4 : index
    %4 = memref.load %arg2[%c4] : memref<5xf32, #tpu.memory_space<smem>>
    %c0_0 = arith.constant 0 : index
    %c0_1 = arith.constant 0 : index
    %c0_2 = arith.constant 0 : index
    %5 = vector.load %arg1[%c0_0, %c0_1, %c0_2] : memref<8x8x128xf32, #tpu.memory_space<vmem>>, vector<1x8x128xf32>
    %6 = vector.shape_cast %5 : vector<1x8x128xf32> to vector<8x128xf32>
    %c1_3 = arith.constant 1 : index
    %c0_4 = arith.constant 0 : index
    %c0_5 = arith.constant 0 : index
    %7 = vector.load %arg1[%c1_3, %c0_4, %c0_5] : memref<8x8x128xf32, #tpu.memory_space<vmem>>, vector<1x8x128xf32>
    %8 = vector.shape_cast %7 : vector<1x8x128xf32> to vector<8x128xf32>
    %9 = vector.broadcast %0 : f32 to vector<8x128xf32>
    %10 = arith.mulf %6, %9 : vector<8x128xf32>
    %11 = vector.broadcast %1 : f32 to vector<8x128xf32>
    %12 = arith.mulf %8, %11 : vector<8x128xf32>
    %13 = arith.addf %10, %12 : vector<8x128xf32>
    %14 = math.tanh %13 : vector<8x128xf32>
    %15 = vector.broadcast %4 : f32 to vector<8x128xf32>
    %16 = arith.mulf %15, %14 : vector<8x128xf32>
    %17 = vector.broadcast %3 : f32 to vector<8x128xf32>
    %18 = arith.addf %17, %16 : vector<8x128xf32>
    %19 = arith.mulf %14, %18 : vector<8x128xf32>
    %20 = vector.broadcast %2 : f32 to vector<8x128xf32>
    %21 = arith.addf %20, %19 : vector<8x128xf32>
    %22 = arith.negf %21 : vector<8x128xf32>
    %23 = math.exp %22 : vector<8x128xf32>
    %cst = arith.constant 1.000000e+00 : f32
    %24 = vector.broadcast %cst : f32 to vector<8x128xf32>
    %25 = arith.addf %24, %23 : vector<8x128xf32>
    %26 = arith.divf %24, %25 : vector<8x128xf32>
    %27 = arith.subf %6, %8 : vector<8x128xf32>
    %28 = arith.mulf %26, %27 : vector<8x128xf32>
    %29 = arith.addf %8, %28 : vector<8x128xf32>
    %c2_6 = arith.constant 2 : index
    %c0_7 = arith.constant 0 : index
    %c0_8 = arith.constant 0 : index
    %30 = vector.load %arg1[%c2_6, %c0_7, %c0_8] : memref<8x8x128xf32, #tpu.memory_space<vmem>>, vector<1x8x128xf32>
    %31 = vector.shape_cast %30 : vector<1x8x128xf32> to vector<8x128xf32>
    %32 = vector.broadcast %0 : f32 to vector<8x128xf32>
    %33 = arith.mulf %29, %32 : vector<8x128xf32>
    %34 = vector.broadcast %1 : f32 to vector<8x128xf32>
    %35 = arith.mulf %31, %34 : vector<8x128xf32>
    %36 = arith.addf %33, %35 : vector<8x128xf32>
    %37 = math.tanh %36 : vector<8x128xf32>
    %38 = vector.broadcast %4 : f32 to vector<8x128xf32>
    %39 = arith.mulf %38, %37 : vector<8x128xf32>
    %40 = vector.broadcast %3 : f32 to vector<8x128xf32>
    %41 = arith.addf %40, %39 : vector<8x128xf32>
    %42 = arith.mulf %37, %41 : vector<8x128xf32>
    %43 = vector.broadcast %2 : f32 to vector<8x128xf32>
    %44 = arith.addf %43, %42 : vector<8x128xf32>
    %45 = arith.negf %44 : vector<8x128xf32>
    %46 = math.exp %45 : vector<8x128xf32>
    %cst_9 = arith.constant 1.000000e+00 : f32
    %47 = vector.broadcast %cst_9 : f32 to vector<8x128xf32>
    %48 = arith.addf %47, %46 : vector<8x128xf32>
    %49 = arith.divf %47, %48 : vector<8x128xf32>
    %50 = arith.subf %29, %31 : vector<8x128xf32>
    %51 = arith.mulf %49, %50 : vector<8x128xf32>
    %52 = arith.addf %31, %51 : vector<8x128xf32>
    %c3_10 = arith.constant 3 : index
    %c0_11 = arith.constant 0 : index
    %c0_12 = arith.constant 0 : index
    %53 = vector.load %arg1[%c3_10, %c0_11, %c0_12] : memref<8x8x128xf32, #tpu.memory_space<vmem>>, vector<1x8x128xf32>
    %54 = vector.shape_cast %53 : vector<1x8x128xf32> to vector<8x128xf32>
    %55 = vector.broadcast %0 : f32 to vector<8x128xf32>
    %56 = arith.mulf %52, %55 : vector<8x128xf32>
    %57 = vector.broadcast %1 : f32 to vector<8x128xf32>
    %58 = arith.mulf %54, %57 : vector<8x128xf32>
    %59 = arith.addf %56, %58 : vector<8x128xf32>
    %60 = math.tanh %59 : vector<8x128xf32>
    %61 = vector.broadcast %4 : f32 to vector<8x128xf32>
    %62 = arith.mulf %61, %60 : vector<8x128xf32>
    %63 = vector.broadcast %3 : f32 to vector<8x128xf32>
    %64 = arith.addf %63, %62 : vector<8x128xf32>
    %65 = arith.mulf %60, %64 : vector<8x128xf32>
    %66 = vector.broadcast %2 : f32 to vector<8x128xf32>
    %67 = arith.addf %66, %65 : vector<8x128xf32>
    %68 = arith.negf %67 : vector<8x128xf32>
    %69 = math.exp %68 : vector<8x128xf32>
    %cst_13 = arith.constant 1.000000e+00 : f32
    %70 = vector.broadcast %cst_13 : f32 to vector<8x128xf32>
    %71 = arith.addf %70, %69 : vector<8x128xf32>
    %72 = arith.divf %70, %71 : vector<8x128xf32>
    %73 = arith.subf %52, %54 : vector<8x128xf32>
    %74 = arith.mulf %72, %73 : vector<8x128xf32>
    %75 = arith.addf %54, %74 : vector<8x128xf32>
    %c4_14 = arith.constant 4 : index
    %c0_15 = arith.constant 0 : index
    %c0_16 = arith.constant 0 : index
    %76 = vector.load %arg1[%c4_14, %c0_15, %c0_16] : memref<8x8x128xf32, #tpu.memory_space<vmem>>, vector<1x8x128xf32>
    %77 = vector.shape_cast %76 : vector<1x8x128xf32> to vector<8x128xf32>
    %78 = vector.broadcast %0 : f32 to vector<8x128xf32>
    %79 = arith.mulf %75, %78 : vector<8x128xf32>
    %80 = vector.broadcast %1 : f32 to vector<8x128xf32>
    %81 = arith.mulf %77, %80 : vector<8x128xf32>
    %82 = arith.addf %79, %81 : vector<8x128xf32>
    %83 = math.tanh %82 : vector<8x128xf32>
    %84 = vector.broadcast %4 : f32 to vector<8x128xf32>
    %85 = arith.mulf %84, %83 : vector<8x128xf32>
    %86 = vector.broadcast %3 : f32 to vector<8x128xf32>
    %87 = arith.addf %86, %85 : vector<8x128xf32>
    %88 = arith.mulf %83, %87 : vector<8x128xf32>
    %89 = vector.broadcast %2 : f32 to vector<8x128xf32>
    %90 = arith.addf %89, %88 : vector<8x128xf32>
    %91 = arith.negf %90 : vector<8x128xf32>
    %92 = math.exp %91 : vector<8x128xf32>
    %cst_17 = arith.constant 1.000000e+00 : f32
    %93 = vector.broadcast %cst_17 : f32 to vector<8x128xf32>
    %94 = arith.addf %93, %92 : vector<8x128xf32>
    %95 = arith.divf %93, %94 : vector<8x128xf32>
    %96 = arith.subf %75, %77 : vector<8x128xf32>
    %97 = arith.mulf %95, %96 : vector<8x128xf32>
    %98 = arith.addf %77, %97 : vector<8x128xf32>
    %c5 = arith.constant 5 : index
    %c0_18 = arith.constant 0 : index
    %c0_19 = arith.constant 0 : index
    %99 = vector.load %arg1[%c5, %c0_18, %c0_19] : memref<8x8x128xf32, #tpu.memory_space<vmem>>, vector<1x8x128xf32>
    %100 = vector.shape_cast %99 : vector<1x8x128xf32> to vector<8x128xf32>
    %101 = vector.broadcast %0 : f32 to vector<8x128xf32>
    %102 = arith.mulf %98, %101 : vector<8x128xf32>
    %103 = vector.broadcast %1 : f32 to vector<8x128xf32>
    %104 = arith.mulf %100, %103 : vector<8x128xf32>
    %105 = arith.addf %102, %104 : vector<8x128xf32>
    %106 = math.tanh %105 : vector<8x128xf32>
    %107 = vector.broadcast %4 : f32 to vector<8x128xf32>
    %108 = arith.mulf %107, %106 : vector<8x128xf32>
    %109 = vector.broadcast %3 : f32 to vector<8x128xf32>
    %110 = arith.addf %109, %108 : vector<8x128xf32>
    %111 = arith.mulf %106, %110 : vector<8x128xf32>
    %112 = vector.broadcast %2 : f32 to vector<8x128xf32>
    %113 = arith.addf %112, %111 : vector<8x128xf32>
    %114 = arith.negf %113 : vector<8x128xf32>
    %115 = math.exp %114 : vector<8x128xf32>
    %cst_20 = arith.constant 1.000000e+00 : f32
    %116 = vector.broadcast %cst_20 : f32 to vector<8x128xf32>
    %117 = arith.addf %116, %115 : vector<8x128xf32>
    %118 = arith.divf %116, %117 : vector<8x128xf32>
    %119 = arith.subf %98, %100 : vector<8x128xf32>
    %120 = arith.mulf %118, %119 : vector<8x128xf32>
    %121 = arith.addf %100, %120 : vector<8x128xf32>
    %c6 = arith.constant 6 : index
    %c0_21 = arith.constant 0 : index
    %c0_22 = arith.constant 0 : index
    %122 = vector.load %arg1[%c6, %c0_21, %c0_22] : memref<8x8x128xf32, #tpu.memory_space<vmem>>, vector<1x8x128xf32>
    %123 = vector.shape_cast %122 : vector<1x8x128xf32> to vector<8x128xf32>
    %124 = vector.broadcast %0 : f32 to vector<8x128xf32>
    %125 = arith.mulf %121, %124 : vector<8x128xf32>
    %126 = vector.broadcast %1 : f32 to vector<8x128xf32>
    %127 = arith.mulf %123, %126 : vector<8x128xf32>
    %128 = arith.addf %125, %127 : vector<8x128xf32>
    %129 = math.tanh %128 : vector<8x128xf32>
    %130 = vector.broadcast %4 : f32 to vector<8x128xf32>
    %131 = arith.mulf %130, %129 : vector<8x128xf32>
    %132 = vector.broadcast %3 : f32 to vector<8x128xf32>
    %133 = arith.addf %132, %131 : vector<8x128xf32>
    %134 = arith.mulf %129, %133 : vector<8x128xf32>
    %135 = vector.broadcast %2 : f32 to vector<8x128xf32>
    %136 = arith.addf %135, %134 : vector<8x128xf32>
    %137 = arith.negf %136 : vector<8x128xf32>
    %138 = math.exp %137 : vector<8x128xf32>
    %cst_23 = arith.constant 1.000000e+00 : f32
    %139 = vector.broadcast %cst_23 : f32 to vector<8x128xf32>
    %140 = arith.addf %139, %138 : vector<8x128xf32>
    %141 = arith.divf %139, %140 : vector<8x128xf32>
    %142 = arith.subf %121, %123 : vector<8x128xf32>
    %143 = arith.mulf %141, %142 : vector<8x128xf32>
    %144 = arith.addf %123, %143 : vector<8x128xf32>
    %c7 = arith.constant 7 : index
    %c0_24 = arith.constant 0 : index
    %c0_25 = arith.constant 0 : index
    %145 = vector.load %arg1[%c7, %c0_24, %c0_25] : memref<8x8x128xf32, #tpu.memory_space<vmem>>, vector<1x8x128xf32>
    %146 = vector.shape_cast %145 : vector<1x8x128xf32> to vector<8x128xf32>
    %147 = vector.broadcast %0 : f32 to vector<8x128xf32>
    %148 = arith.mulf %144, %147 : vector<8x128xf32>
    %149 = vector.broadcast %1 : f32 to vector<8x128xf32>
    %150 = arith.mulf %146, %149 : vector<8x128xf32>
    %151 = arith.addf %148, %150 : vector<8x128xf32>
    %152 = math.tanh %151 : vector<8x128xf32>
    %153 = vector.broadcast %4 : f32 to vector<8x128xf32>
    %154 = arith.mulf %153, %152 : vector<8x128xf32>
    %155 = vector.broadcast %3 : f32 to vector<8x128xf32>
    %156 = arith.addf %155, %154 : vector<8x128xf32>
    %157 = arith.mulf %152, %156 : vector<8x128xf32>
    %158 = vector.broadcast %2 : f32 to vector<8x128xf32>
    %159 = arith.addf %158, %157 : vector<8x128xf32>
    %160 = arith.negf %159 : vector<8x128xf32>
    %161 = math.exp %160 : vector<8x128xf32>
    %cst_26 = arith.constant 1.000000e+00 : f32
    %162 = vector.broadcast %cst_26 : f32 to vector<8x128xf32>
    %163 = arith.addf %162, %161 : vector<8x128xf32>
    %164 = arith.divf %162, %163 : vector<8x128xf32>
    %165 = arith.subf %144, %146 : vector<8x128xf32>
    %166 = arith.mulf %164, %165 : vector<8x128xf32>
    %167 = arith.addf %146, %166 : vector<8x128xf32>
    %c0_27 = arith.constant 0 : index
    %c0_28 = arith.constant 0 : index
    %168 = vector.load %arg3[%c0_27, %c0_28] : memref<8x128xf32, #tpu.memory_space<vmem>>, vector<8x128xf32>
    tpu.vector_store %arg3[%c0_27, %c0_28], %167 {strides = array<i32>} : memref<8x128xf32, #tpu.memory_space<vmem>>, vector<8x128xf32>,
    return
  }
  func.func @transform_0(%arg0: i32) -> (i32, i32, i32) {
    %c0_i32 = arith.constant 0 : i32
    %c0_i32_0 = arith.constant 0 : i32
    %c0_i32_1 = arith.constant 0 : i32
    return %c0_i32, %c0_i32_0, %arg0 : i32, i32, i32
  }
  func.func @transform_1(%arg0: i32) -> i32 {
    %c0_i32 = arith.constant 0 : i32
    %c0_i32_0 = arith.constant 0 : i32
    return %c0_i32 : i32
  }
  func.func @transform_2(%arg0: i32) -> (i32, i32) {
    %c0_i32 = arith.constant 0 : i32
    %c0_i32_0 = arith.constant 0 : i32
    return %c0_i32, %arg0 : i32, i32
  }
}

</mosaic_0001>

<llo_original>
// kernel: tpu_custom_call.1
$region0: #{tpu_custom_call.1}
  #allocation0 [shape = 'u32[]', space=smem, size = 0x4, offset = 0x4, fixed_abs, tag = 'smem constant byte address 0x4 - core index']
  #allocation1 [shape = 'u32[144,128]{1,0:T(1,128)}', space=vmem, size = 0x12000, scoped, tag = 'internal scratch']
  %s0 = inlined_call_operand.hbm [shape: f32[8,8,128], index: 0, kind: input, shape index: {}]
  %s1 = inlined_call_operand.vmem [shape: f32[5], index: 1, kind: input, shape index: {}]
  %s2 = inlined_call_operand.hbm [shape: f32[8,128], index: 2, kind: output, shape index: {}]
  %s3 = sld [smem:[#allocation0]]
  $region26: #{tpu_custom_call.1} parent=0
    _
  %s5 = ssub.s32 1, %s3
  %s6 = scalar_select 0, %s5, %s3
  $region1: #{tpu_custom_call.1} parent=0
    #allocation2 [shape = 'u8[32768]{0}', space=vmem, size = 0x8000, scoped, tag = 'input window, operand 0, single buffered']
    #allocation3 [shape = 's32[1]{0}', space=sflag, size = 0x4, scoped, tag = 'scoped memory for tpu_custom_call.1']
    #allocation4 [shape = 's32[1]{0}', space=sflag, size = 0x4, scoped, tag = 'scoped memory for tpu_custom_call.1']
    #allocation5 [shape = 's32[1]{0}', space=sflag, size = 0x4, scoped, tag = 'scoped memory for tpu_custom_call.1']
    #allocation6 [shape = 'u8[512]{0}', space=smem, size = 0x200, scoped, tag = 'input window, operand 1, single buffered']
    #allocation7 [shape = 'u8[4096]{0}', space=vmem, size = 0x1000, scoped, tag = 'output window, operand 0, single buffered']
    %7 = vsyncpa [#allocation3], 0
    %8 = vsyncpa [#allocation5], 0
    %9 = vsyncpa [#allocation4], 0
    // Predicated region
    $region2: #{tpu_custom_call.1} parent=1 // pred_check
      _
    $region3: #{tpu_custom_call.1} parent=1 // pred_check_branch
      %11 = sbr.rel (0) target = $region5
    $region4: #{tpu_custom_call.1} parent=1 // pred_region
      %s13 = ssub.s32 1024, 1024
      %14 = vsyncadd [#allocation3], %s13
      %s15 = sshll.u32 [#allocation2], 4
      %s16 = int_to_ptr.vmem [resolvable:$true] %s15
      %21 = dma.hbm_to_vmem [thread:$0]  %s0, 1024, %s16, [#allocation3], 128, 128, 8
    $region5: #{tpu_custom_call.1} parent=1 // pred_fallthru
      _
    // Predicated region
    $region6: #{tpu_custom_call.1} parent=1 // pred_check
      _
    $region7: #{tpu_custom_call.1} parent=1 // pred_check_branch
      %23 = sbr.rel (0) target = $region9
    $region8: #{tpu_custom_call.1} parent=1 // pred_region
      %s25 = ssub.s32 16, 16
      %26 = vsyncadd [#allocation5], %s25
      %s28 = sshll.u32 %s1, 4
      %s29 = int_to_ptr.vmem [resolvable:$true] %s28
      %31 = dma.vmem_to_smem %s29, 16, [#allocation6], [#allocation5]
    $region9: #{tpu_custom_call.1} parent=1 // pred_fallthru
      _
    // Predicated region
    $region10: #{tpu_custom_call.1} parent=1 // pred_check
      _
    $region11: #{tpu_custom_call.1} parent=1 // pred_check_branch
      %33 = sbr.rel (0) target = $region13
    $region12: #{tpu_custom_call.1} parent=1 // pred_region
      %34 = dma.done [#allocation3], 1024
    $region13: #{tpu_custom_call.1} parent=1 // pred_fallthru
      _
    // Predicated region
    $region14: #{tpu_custom_call.1} parent=1 // pred_check
      _
    $region15: #{tpu_custom_call.1} parent=1 // pred_check_branch
      %36 = sbr.rel (0) target = $region17
    $region16: #{tpu_custom_call.1} parent=1 // pred_region
      %37 = dma.done [#allocation5], 16
    $region17: #{tpu_custom_call.1} parent=1 // pred_fallthru
      _
    %38 = sfence
    %s39 = sld [smem:[#allocation6]]
    %s40 = sld [smem:[#allocation6 + $0x1]]
    %s41 = sld [smem:[#allocation6 + $0x2]]
    %s42 = sld [smem:[#allocation6 + $0x3]]
    %s43 = sld [smem:[#allocation6 + $0x4]]
    %v44 = vld [vmem:[#allocation2] sm:$0xff]
    %s45 = scalar_lea.vmem [#allocation2], 8
    %v46 = vld [vmem:[%s45] sm:$0xff]
    %v47 = vstv %s39
    %v48 = vmul.f32 %v44, %v47
    %v49 = vstv %s40
    %v50 = vmul.f32 %v46, %v49
    %v51 = vadd.f32 %v48, %v50
    %v52 = vtanh.pop %v51
    %v53 = vstv %s43
    %v54 = vmul.f32 %v53, %v52
    %v55 = vstv %s42
    %v56 = vadd.f32 %v55, %v54
    %v57 = vmul.f32 %v52, %v56
    %v58 = vstv %s41
    %v59 = vadd.f32 %v58, %v57
    %v60 = vxor.u32 %v59, 2147483648
    %v61 = vmul.f32 %v60, 1.442695
    %v62 = vpow.pop %v61
    %v63 = vadd.f32 %v62, 1.0
    %v64 = vrcp.pop %v63
    %v65 = vmul.f32 1.0, %v64
    %v66 = vsub.f32 %v44, %v46
    %v67 = vmul.f32 %v65, %v66
    %v68 = vadd.f32 %v46, %v67
    %s69 = scalar_lea.vmem [#allocation2], 16
    %v70 = vld [vmem:[%s69] sm:$0xff]
    %v71 = vmul.f32 %v68, %v47
    %v72 = vmul.f32 %v70, %v49
    %v73 = vadd.f32 %v71, %v72
    %v74 = vtanh.pop %v73
    %v75 = vmul.f32 %v53, %v74
    %v76 = vadd.f32 %v55, %v75
    %v77 = vmul.f32 %v74, %v76
    %v78 = vadd.f32 %v58, %v77
    %v79 = vxor.u32 %v78, 2147483648
    %v80 = vmul.f32 %v79, 1.442695
    %v81 = vpow.pop %v80
    %v82 = vadd.f32 %v81, 1.0
    %v83 = vrcp.pop %v82
    %v84 = vmul.f32 1.0, %v83
    %v85 = vsub.f32 %v68, %v70
    %v86 = vmul.f32 %v84, %v85
    %v87 = vadd.f32 %v70, %v86
    %s88 = scalar_lea.vmem [#allocation2], 24
    %v89 = vld [vmem:[%s88] sm:$0xff]
    %v90 = vmul.f32 %v87, %v47
    %v91 = vmul.f32 %v89, %v49
    %v92 = vadd.f32 %v90, %v91
    %v93 = vtanh.pop %v92
    %v94 = vmul.f32 %v53, %v93
    %v95 = vadd.f32 %v55, %v94
    %v96 = vmul.f32 %v93, %v95
    %v97 = vadd.f32 %v58, %v96
    %v98 = vxor.u32 %v97, 2147483648
    %v99 = vmul.f32 %v98, 1.442695
    %v100 = vpow.pop %v99
    %v101 = vadd.f32 %v100, 1.0
    %v102 = vrcp.pop %v101
    %v103 = vmul.f32 1.0, %v102
    %v104 = vsub.f32 %v87, %v89
    %v105 = vmul.f32 %v103, %v104
    %v106 = vadd.f32 %v89, %v105
    %s107 = scalar_lea.vmem [#allocation2], 32
    %v108 = vld [vmem:[%s107] sm:$0xff]
    %v109 = vmul.f32 %v106, %v47
    %v110 = vmul.f32 %v108, %v49
    %v111 = vadd.f32 %v109, %v110
    %v112 = vtanh.pop %v111
    %v113 = vmul.f32 %v53, %v112
    %v114 = vadd.f32 %v55, %v113
    %v115 = vmul.f32 %v112, %v114
    %v116 = vadd.f32 %v58, %v115
    %v117 = vxor.u32 %v116, 2147483648
    %v118 = vmul.f32 %v117, 1.442695
    %v119 = vpow.pop %v118
    %v120 = vadd.f32 %v119, 1.0
    %v121 = vrcp.pop %v120
    %v122 = vmul.f32 1.0, %v121
    %v123 = vsub.f32 %v106, %v108
    %v124 = vmul.f32 %v122, %v123
    %v125 = vadd.f32 %v108, %v124
    %s126 = scalar_lea.vmem [#allocation2], 40
    %v127 = vld [vmem:[%s126] sm:$0xff]
    %v128 = vmul.f32 %v125, %v47
    %v129 = vmul.f32 %v127, %v49
    %v130 = vadd.f32 %v128, %v129
    %v131 = vtanh.pop %v130
    %v132 = vmul.f32 %v53, %v131
    %v133 = vadd.f32 %v55, %v132
    %v134 = vmul.f32 %v131, %v133
    %v135 = vadd.f32 %v58, %v134
    %v136 = vxor.u32 %v135, 2147483648
    %v137 = vmul.f32 %v136, 1.442695
    %v138 = vpow.pop %v137
    %v139 = vadd.f32 %v138, 1.0
    %v140 = vrcp.pop %v139
    %v141 = vmul.f32 1.0, %v140
    %v142 = vsub.f32 %v125, %v127
    %v143 = vmul.f32 %v141, %v142
    %v144 = vadd.f32 %v127, %v143
    %s145 = scalar_lea.vmem [#allocation2], 48
    %v146 = vld [vmem:[%s145] sm:$0xff]
    %v147 = vmul.f32 %v144, %v47
    %v148 = vmul.f32 %v146, %v49
    %v149 = vadd.f32 %v147, %v148
    %v150 = vtanh.pop %v149
    %v151 = vmul.f32 %v53, %v150
    %v152 = vadd.f32 %v55, %v151
    %v153 = vmul.f32 %v150, %v152
    %v154 = vadd.f32 %v58, %v153
    %v155 = vxor.u32 %v154, 2147483648
    %v156 = vmul.f32 %v155, 1.442695
    %v157 = vpow.pop %v156
    %v158 = vadd.f32 %v157, 1.0
    %v159 = vrcp.pop %v158
    %v160 = vmul.f32 1.0, %v159
    %v161 = vsub.f32 %v144, %v146
    %v162 = vmul.f32 %v160, %v161
    %v163 = vadd.f32 %v146, %v162
    %s164 = scalar_lea.vmem [#allocation2], 56
    %v165 = vld [vmem:[%s164] sm:$0xff]
    %v166 = vmul.f32 %v163, %v47
    %v167 = vmul.f32 %v165, %v49
    %v168 = vadd.f32 %v166, %v167
    %v169 = vtanh.pop %v168
    %v170 = vmul.f32 %v53, %v169
    %v171 = vadd.f32 %v55, %v170
    %v172 = vmul.f32 %v169, %v171
    %v173 = vadd.f32 %v58, %v172
    %v174 = vxor.u32 %v173, 2147483648
    %v175 = vmul.f32 %v174, 1.442695
    %v176 = vpow.pop %v175
    %v177 = vadd.f32 %v176, 1.0
    %v178 = vrcp.pop %v177
    %v179 = vmul.f32 1.0, %v178
    %v180 = vsub.f32 %v163, %v165
    %v181 = vmul.f32 %v179, %v180
    %v182 = vadd.f32 %v165, %v181
    %183 = vst [vmem:[#allocation7] sm:$0xff] %v182
    // Predicated region
    $region18: #{tpu_custom_call.1} parent=1 // pred_check
      _
    $region19: #{tpu_custom_call.1} parent=1 // pred_check_branch
      %185 = sbr.rel (0) target = $region21
    $region20: #{tpu_custom_call.1} parent=1 // pred_region
      %s187 = ssub.s32 128, 128
      %188 = vsyncadd [#allocation4], %s187
      %s190 = sshll.u32 [#allocation7], 4
      %s191 = int_to_ptr.vmem [resolvable:$true] %s190
      %193 = dma.vmem_to_hbm [thread:$0]  %s191, 128, %s2, [#allocation4]
    $region21: #{tpu_custom_call.1} parent=1 // pred_fallthru
      _
    // Predicated region
    $region22: #{tpu_custom_call.1} parent=1 // pred_check
      _
    $region23: #{tpu_custom_call.1} parent=1 // pred_check_branch
      %195 = sbr.rel (0) target = $region25
    $region24: #{tpu_custom_call.1} parent=1 // pred_region
      %196 = dma.done [#allocation4], 128
    $region25: #{tpu_custom_call.1} parent=1 // pred_fallthru
      _
    %197 = vsyncpa [#allocation3], 1
    %198 = vsyncpa [#allocation4], 1
    %199 = vsyncpa [#allocation5], 1

</llo_original>
